<compile_context>
chip_gen: v6e
topology: v6e:2x2x1
jax: 0.10.0
libtpu: 0.0.40
codegen_flags: <defaults>
</compile_context>

<pallas_src>
import jax
import jax.numpy as jnp
import numpy as np
from jax.experimental import pallas as pl
from jax.experimental.pallas import tpu as pltpu


def mlp_decoder_kernel(x_ref, w_ref, b1_ref, gamma_ref, beta_ref, w2_ref, b2_ref,
                       out_ref):
    # fc1 with fc3 + residual + bias folded in: one long-K bf16 matmul, f32 accumulation
    h = jnp.dot(x_ref[...], w_ref[...], preferred_element_type=jnp.float32)
    h = h + b1_ref[...]                                            # (tm, hidden) f32

    # LayerNorm over hidden dim (eps matches nn.LayerNorm default 1e-5), all f32
    mean = jnp.mean(h, axis=-1, keepdims=True)
    diff = h - mean
    var = jnp.mean(diff * diff, axis=-1, keepdims=True)
    hn = diff * jax.lax.rsqrt(var + 1e-5)
    hn = hn * gamma_ref[...] + beta_ref[...]

    # ReLU + fc2 (bf16 operands, f32 acc; lane-padded output -> unmasked full-width vst)
    hr = jnp.maximum(hn, 0.0).astype(w2_ref.dtype)
    out = jnp.dot(hr, w2_ref[...], preferred_element_type=jnp.float32) + b2_ref[...]
    out_ref[...] = out.astype(out_ref.dtype)


def _tpu_vmem_info():
    """(physical VMEM bytes, chip-has-2-TensorCores).  v7x: 64 MiB / 2 TCs; v5e/v6e:
    128 MiB / 1 TC.  Falls back to the conservative (64 MiB, 2 TC) assumption."""
    try:
        vmem = int(pltpu.get_tpu_info().vmem_capacity_bytes)
    except Exception:
        vmem = 64 * 1024 * 1024
    two_cores = vmem <= 96 * 1024 * 1024
    return vmem, two_cores


def _choose_tm(M, k_dim, hidden_dim, out_dim_p, vmem_budget_bytes, two_cores):
    """Row tile: multiple of 16 (bf16 sublane packing) dividing M, fitting the VMEM
    budget with single-buffered weights + double-buffered activation blocks, preferring
    tm >= min(M, 256) (fill the MXU); on 2-TC chips prefer an even grid so the row axis
    shards across both TensorCores, on 1-TC chips prefer the fewest grid steps."""
    if M % 16 != 0:
        return M  # ragged/tiny M: single full-extent block (always a legal BlockSpec)
    bf16, f32 = 2, 4
    weight_bytes = (bf16 * (k_dim * hidden_dim + hidden_dim * out_dim_p)
                    + f32 * (3 * hidden_dim + out_dim_p))
    row_bytes = (2 * bf16 * k_dim          # double-buffered bf16 input block
                 + 2 * f32 * out_dim_p     # double-buffered f32 output block
                 + 3 * f32 * hidden_dim)   # in-kernel f32 temporaries (h / hn / hr)
    avail = max(vmem_budget_bytes - weight_bytes, 16 * row_bytes)
    cap = max(16, (avail // row_bytes) // 16 * 16)
    cands = [t for t in range(16, M + 1, 16) if M % t == 0 and t <= cap]
    min_tm = min(M, 256)
    big = [t for t in cands if t >= min_tm] or cands
    if two_cores:
        even = ([t for t in big if (M // t) % 2 == 0]
                or [t for t in cands if (M // t) % 2 == 0])
        if even:
            return max(even)
    return max(big)


def mlp_decoder_forward(encoder_output, obs_seq_embedding, params, config):
    B = config["batchsize"]
    obs_len = config["observation_length"]
    pred_len = config["prediction_length"]
    embed_dim = config["embed_dim"]
    channels = config["channels"]
    num_obj = encoder_output.shape[1]

    input_dim = embed_dim * obs_len
    hidden_dim = 2 * input_dim
    output_dim = pred_len * 2
    obs_dim = obs_len * channels
    k_dim = input_dim + obs_dim
    out_dim_p = ((output_dim + 127) // 128) * 128
    M = B * num_obj

    # ---- layout plumbing (reshapes + one transpose + one concat), then bf16 cast ----
    enc2d = encoder_output.reshape(M, input_dim).astype(jnp.float32)
    obs2d = jnp.transpose(obs_seq_embedding, (0, 2, 1, 3)).reshape(M, obs_dim)
    obs2d = obs2d.astype(jnp.float32)
    x2d = jnp.concatenate([enc2d, obs2d], axis=-1).astype(jnp.bfloat16)   # (M, k_dim)

    # ---- fold fc3 (+ bias) and the residual into fc1; stack into one weight ----
    w1 = params["w1"].astype(jnp.float32)                          # (input_dim, hidden)
    w3 = params["w3"].astype(jnp.float32)                          # (channels, embed)
    w1_3d = w1.reshape(obs_len, embed_dim, hidden_dim)
    w3f = jnp.einsum("ce,oeh->och", w3, w1_3d).reshape(obs_dim, hidden_dim)
    wcat = jnp.concatenate([w1, w3f], axis=0).astype(jnp.bfloat16)        # (k_dim, hid)
    b1f = (params["b1"] + jnp.tile(params["b3"], obs_len) @ w1).reshape(1, hidden_dim)
    b1f = b1f.astype(jnp.float32)

    gamma = params["gamma"].reshape(1, hidden_dim).astype(jnp.float32)
    beta = params["beta"].reshape(1, hidden_dim).astype(jnp.float32)

    # ---- lane-dense (128-padded) fc2 weights -> unmasked full-width output stores ----
    w2p = jnp.pad(params["w2"].astype(jnp.float32),
                  ((0, 0), (0, out_dim_p - output_dim))).astype(jnp.bfloat16)
    b2p = jnp.pad(params["b2"].astype(jnp.float32),
                  (0, out_dim_p - output_dim)).reshape(1, out_dim_p)

    vmem_cap, two_cores = _tpu_vmem_info()
    vmem_budget = (vmem_cap * 3) // 4      # 48 MiB on 64 MiB chips, 96 MiB on 128 MiB
    tm = _choose_tm(M, k_dim, hidden_dim, out_dim_p, vmem_budget, two_cores)
    grid = (M // tm,)

    def run(single_buffer_weights):
        pm = pl.Buffered(1) if single_buffer_weights else None

        def row_spec(shape):
            return pl.BlockSpec(shape, lambda i: (i, 0))

        def rep_spec(shape):
            if pm is None:
                return pl.BlockSpec(shape, lambda i: (0, 0))
            return pl.BlockSpec(shape, lambda i: (0, 0), pipeline_mode=pm)

        return pl.pallas_call(
            mlp_decoder_kernel,
            out_shape=jax.ShapeDtypeStruct((M, out_dim_p), jnp.float32),
            grid=grid,
            in_specs=[
                row_spec((tm, k_dim)),              # [enc | obs] activations (bf16)
                rep_spec((k_dim, hidden_dim)),      # [w1 ; w3fused]          (bf16)
                rep_spec((1, hidden_dim)),          # fused fc1 bias          (f32)
                rep_spec((1, hidden_dim)),          # LN gamma
                rep_spec((1, hidden_dim)),          # LN beta
                rep_spec((hidden_dim, out_dim_p)),  # fc2 weight (bf16, lane-padded)
                rep_spec((1, out_dim_p)),           # fc2 bias   (f32, lane-padded)
            ],
            out_specs=row_spec((tm, out_dim_p)),
            compiler_params=pltpu.CompilerParams(
                dimension_semantics=("parallel",),
                vmem_limit_bytes=int(vmem_budget),
            ),
        )(x2d, wcat, b1f, gamma, beta, w2p, b2p)

    try:
        out = run(True)
    except Exception:
        # pl.Buffered(1) unsupported on this jax/Mosaic version -> default buffering.
        out = run(False)

    return out[:, :output_dim].reshape(B, num_obj, pred_len, 2)


def reference_forward(encoder_output, obs_seq_embedding, params, config):
    """Pure-JAX f32 reference mirroring the PyTorch module (unfused)."""
    B = config["batchsize"]
    obs_len = config["observation_length"]
    pred_len = config["prediction_length"]
    embed_dim = config["embed_dim"]
    input_dim = embed_dim * obs_len

    obs = obs_seq_embedding @ params["w3"] + params["b3"]          # fc3
    obs = jnp.transpose(obs, (0, 2, 1, 3))                         # permute(0,2,1,3)
    aggr = encoder_output + obs
    loc = aggr.reshape(-1, input_dim)
    loc = loc @ params["w1"] + params["b1"]                        # fc1
    mean = jnp.mean(loc, axis=-1, keepdims=True)
    var = jnp.mean((loc - mean) ** 2, axis=-1, keepdims=True)
    loc = (loc - mean) / jnp.sqrt(var + 1e-5)
    loc = loc * params["gamma"] + params["beta"]                   # layernorm
    loc = jnp.maximum(loc, 0.0)                                    # relu
    loc = loc @ params["w2"] + params["b2"]                        # fc2
    return loc.reshape(B, -1, pred_len, 2)


if __name__ == "__main__":
    # small, self-consistent config; M = B*num_obj = 16 -> one 16-row bf16-packed block
    config = dict(
        batchsize=2,
        embed_dim=16,
        observation_length=8,
        prediction_length=12,
        channels=4,
    )
    num_obj = 8
    B = config["batchsize"]
    obs_len = config["observation_length"]
    pred_len = config["prediction_length"]
    embed_dim = config["embed_dim"]
    channels = config["channels"]
    input_dim = embed_dim * obs_len        # 128
    hidden_dim = input_dim * 2             # 256
    output_dim = pred_len * 2              # 24

    key = jax.random.PRNGKey(0)
    ks = jax.random.split(key, 10)

    def lin_init(kw, kb, fan_in, fan_out):
        bound = 1.0 / np.sqrt(fan_in)
        w = jax.random.uniform(kw, (fan_in, fan_out), jnp.float32, -bound, bound)
        b = jax.random.uniform(kb, (fan_out,), jnp.float32, -bound, bound)
        return w, b

    w3, b3 = lin_init(ks[0], ks[1], channels, embed_dim)
    w1, b1 = lin_init(ks[2], ks[3], input_dim, hidden_dim)
    w2, b2 = lin_init(ks[4], ks[5], hidden_dim, output_dim)
    params = dict(
        w3=w3, b3=b3, w1=w1, b1=b1, w2=w2, b2=b2,
        gamma=jnp.ones((hidden_dim,), jnp.float32),
        beta=jnp.zeros((hidden_dim,), jnp.float32),
    )

    encoder_output = jax.random.normal(
        ks[6], (B, num_obj, obs_len, embed_dim), jnp.float32)
    obs_seq_embedding = jax.random.normal(
        ks[7], (B, obs_len, num_obj, channels), jnp.float32)

    out = mlp_decoder_forward(encoder_output, obs_seq_embedding, params, config)
    out = jax.block_until_ready(out)

    ref = reference_forward(encoder_output, obs_seq_embedding, params, config)
    assert out.shape == (B, num_obj, pred_len, 2), out.shape
    # bf16 matmul operands (f32 accumulation) -> relaxed tolerance vs the f32 reference
    np.testing.assert_allclose(np.asarray(out), np.asarray(ref), rtol=3e-2, atol=3e-2)

    print("KERNEL_OK")
</pallas_src>

<mosaic_0001>
module attributes {stable_mosaic.version = 11 : i64} {
  func.func @mlp_decoder_kernel(%arg0: i32, %arg1: memref<16x160xbf16, #tpu.memory_space<vmem>>, %arg2: memref<160x256xbf16, #tpu.memory_space<vmem>>, %arg3: memref<1x256xf32, #tpu.memory_space<vmem>>, %arg4: memref<1x256xf32, #tpu.memory_space<vmem>>, %arg5: memref<1x256xf32, #tpu.memory_space<vmem>>, %arg6: memref<256x128xbf16, #tpu.memory_space<vmem>>, %arg7: memref<1x128xf32, #tpu.memory_space<vmem>>, %arg8: memref<16x128xf32, #tpu.memory_space<vmem>>) attributes {dimension_semantics = [#tpu.dimension_semantics<parallel>], iteration_bounds = array<i64: 1>, scalar_prefetch = 0 : i64, scratch_operands = 0 : i64, tpu.core_type = #tpu.core_type<tc>, window_params = [{transform_indices = @transform_0, window_bounds = array<i64: 16, 160>}, {pipeline_mode = #tpu.pipeline_mode<synchronous>, transform_indices = @transform_1, window_bounds = array<i64: 160, 256>}, {pipeline_mode = #tpu.pipeline_mode<synchronous>, transform_indices = @transform_2, window_bounds = array<i64: 1, 256>}, {pipeline_mode = #tpu.pipeline_mode<synchronous>, transform_indices = @transform_3, window_bounds = array<i64: 1, 256>}, {pipeline_mode = #tpu.pipeline_mode<synchronous>, transform_indices = @transform_4, window_bounds = array<i64: 1, 256>}, {pipeline_mode = #tpu.pipeline_mode<synchronous>, transform_indices = @transform_5, window_bounds = array<i64: 256, 128>}, {pipeline_mode = #tpu.pipeline_mode<synchronous>, transform_indices = @transform_6, window_bounds = array<i64: 1, 128>}, {transform_indices = @transform_7, window_bounds = array<i64: 16, 128>}]} {
    %c0 = arith.constant 0 : index
    %c0_0 = arith.constant 0 : index
    %0 = vector.load %arg1[%c0, %c0_0] : memref<16x160xbf16, #tpu.memory_space<vmem>>, vector<16x160xbf16>
    %c0_1 = arith.constant 0 : index
    %c0_2 = arith.constant 0 : index
    %1 = vector.load %arg2[%c0_1, %c0_2] : memref<160x256xbf16, #tpu.memory_space<vmem>>, vector<160x256xbf16>
    %cst = arith.constant dense<0.000000e+00> : vector<16x256xf32>
    %2 = tpu.matmul %0, %1, %cst {dimension_numbers = #tpu.dot_dimension_numbers<[1], [0], [0], [1], [0, 0, 1, 1], [], []>} : vector<16x160xbf16>, vector<160x256xbf16>, vector<16x256xf32> -> vector<16x256xf32>
    %c0_3 = arith.constant 0 : index
    %c0_4 = arith.constant 0 : index
    %3 = vector.load %arg3[%c0_3, %c0_4] : memref<1x256xf32, #tpu.memory_space<vmem>>, vector<1x256xf32>
    %4 = vector.broadcast %3 : vector<1x256xf32> to vector<16x256xf32>
    %5 = arith.addf %2, %4 : vector<16x256xf32>
    %cst_5 = arith.constant dense<0.000000e+00> : vector<16xf32>
    %6 = vector.multi_reduction <add>, %5, %cst_5 [1] : vector<16x256xf32> to vector<16xf32>
    %7 = vector.shape_cast %6 : vector<16xf32> to vector<16x1xf32>
    %cst_6 = arith.constant 2.560000e+02 : f32
    %8 = vector.broadcast %cst_6 : f32 to vector<16x1xf32>
    %9 = arith.divf %7, %8 : vector<16x1xf32>
    %10 = vector.broadcast %9 : vector<16x1xf32> to vector<16x256xf32>
    %11 = arith.subf %5, %10 : vector<16x256xf32>
    %12 = arith.mulf %11, %11 : vector<16x256xf32>
    %cst_7 = arith.constant dense<0.000000e+00> : vector<16xf32>
    %13 = vector.multi_reduction <add>, %12, %cst_7 [1] : vector<16x256xf32> to vector<16xf32>
    %14 = vector.shape_cast %13 : vector<16xf32> to vector<16x1xf32>
    %cst_8 = arith.constant 2.560000e+02 : f32
    %15 = vector.broadcast %cst_8 : f32 to vector<16x1xf32>
    %16 = arith.divf %14, %15 : vector<16x1xf32>
    %cst_9 = arith.constant 9.99999974E-6 : f32
    %17 = vector.broadcast %cst_9 : f32 to vector<16x1xf32>
    %18 = arith.addf %16, %17 : vector<16x1xf32>
    %19 = math.rsqrt %18 : vector<16x1xf32>
    %20 = vector.broadcast %19 : vector<16x1xf32> to vector<16x256xf32>
    %21 = arith.mulf %11, %20 : vector<16x256xf32>
    %c0_10 = arith.constant 0 : index
    %c0_11 = arith.constant 0 : index
    %22 = vector.load %arg4[%c0_10, %c0_11] : memref<1x256xf32, #tpu.memory_space<vmem>>, vector<1x256xf32>
    %23 = vector.broadcast %22 : vector<1x256xf32> to vector<16x256xf32>
    %24 = arith.mulf %21, %23 : vector<16x256xf32>
    %c0_12 = arith.constant 0 : index
    %c0_13 = arith.constant 0 : index
    %25 = vector.load %arg5[%c0_12, %c0_13] : memref<1x256xf32, #tpu.memory_space<vmem>>, vector<1x256xf32>
    %26 = vector.broadcast %25 : vector<1x256xf32> to vector<16x256xf32>
    %27 = arith.addf %24, %26 : vector<16x256xf32>
    %cst_14 = arith.constant 0.000000e+00 : f32
    %28 = vector.broadcast %cst_14 : f32 to vector<16x256xf32>
    %29 = arith.maximumf %27, %28 : vector<16x256xf32>
    %30 = arith.truncf %29 : vector<16x256xf32> to vector<16x256xbf16>
    %c0_15 = arith.constant 0 : index
    %c0_16 = arith.constant 0 : index
    %31 = vector.load %arg6[%c0_15, %c0_16] : memref<256x128xbf16, #tpu.memory_space<vmem>>, vector<256x128xbf16>
    %cst_17 = arith.constant dense<0.000000e+00> : vector<16x128xf32>
    %32 = tpu.matmul %30, %31, %cst_17 {dimension_numbers = #tpu.dot_dimension_numbers<[1], [0], [0], [1], [0, 0, 1, 1], [], []>} : vector<16x256xbf16>, vector<256x128xbf16>, vector<16x128xf32> -> vector<16x128xf32>
    %c0_18 = arith.constant 0 : index
    %c0_19 = arith.constant 0 : index
    %33 = vector.load %arg7[%c0_18, %c0_19] : memref<1x128xf32, #tpu.memory_space<vmem>>, vector<1x128xf32>
    %34 = vector.broadcast %33 : vector<1x128xf32> to vector<16x128xf32>
    %35 = arith.addf %32, %34 : vector<16x128xf32>
    %c0_20 = arith.constant 0 : index
    %c0_21 = arith.constant 0 : index
    %36 = vector.load %arg8[%c0_20, %c0_21] : memref<16x128xf32, #tpu.memory_space<vmem>>, vector<16x128xf32>
    tpu.vector_store %arg8[%c0_20, %c0_21], %35 {strides = array<i32>} : memref<16x128xf32, #tpu.memory_space<vmem>>, vector<16x128xf32>,
    return
  }
  func.func @transform_0(%arg0: i32) -> (i32, i32) {
    %c0_i32 = arith.constant 0 : i32
    %c0_i32_0 = arith.constant 0 : i32
    return %arg0, %c0_i32 : i32, i32
  }
  func.func @transform_1(%arg0: i32) -> (i32, i32) {
    %c0_i32 = arith.constant 0 : i32
    %c0_i32_0 = arith.constant 0 : i32
    %c0_i32_1 = arith.constant 0 : i32
    return %c0_i32, %c0_i32_0 : i32, i32
  }
  func.func @transform_2(%arg0: i32) -> (i32, i32) {
    %c0_i32 = arith.constant 0 : i32
    %c0_i32_0 = arith.constant 0 : i32
    %c0_i32_1 = arith.constant 0 : i32
    return %c0_i32, %c0_i32_0 : i32, i32
  }
  func.func @transform_3(%arg0: i32) -> (i32, i32) {
    %c0_i32 = arith.constant 0 : i32
    %c0_i32_0 = arith.constant 0 : i32
    %c0_i32_1 = arith.constant 0 : i32
    return %c0_i32, %c0_i32_0 : i32, i32
  }
  func.func @transform_4(%arg0: i32) -> (i32, i32) {
    %c0_i32 = arith.constant 0 : i32
    %c0_i32_0 = arith.constant 0 : i32
    %c0_i32_1 = arith.constant 0 : i32
    return %c0_i32, %c0_i32_0 : i32, i32
  }
  func.func @transform_5(%arg0: i32) -> (i32, i32) {
    %c0_i32 = arith.constant 0 : i32
    %c0_i32_0 = arith.constant 0 : i32
    %c0_i32_1 = arith.constant 0 : i32
    return %c0_i32, %c0_i32_0 : i32, i32
  }
  func.func @transform_6(%arg0: i32) -> (i32, i32) {
    %c0_i32 = arith.constant 0 : i32
    %c0_i32_0 = arith.constant 0 : i32
    %c0_i32_1 = arith.constant 0 : i32
    return %c0_i32, %c0_i32_0 : i32, i32
  }
  func.func @transform_7(%arg0: i32) -> (i32, i32) {
    %c0_i32 = arith.constant 0 : i32
    %c0_i32_0 = arith.constant 0 : i32
    return %arg0, %c0_i32 : i32, i32
  }
}

module attributes {stable_mosaic.version = 11 : i64} {
  func.func @mlp_decoder_kernel(%arg0: i32, %arg1: memref<16x160xbf16, #tpu.memory_space<vmem>>, %arg2: memref<160x256xbf16, #tpu.memory_space<vmem>>, %arg3: memref<1x256xf32, #tpu.memory_space<vmem>>, %arg4: memref<1x256xf32, #tpu.memory_space<vmem>>, %arg5: memref<1x256xf32, #tpu.memory_space<vmem>>, %arg6: memref<256x128xbf16, #tpu.memory_space<vmem>>, %arg7: memref<1x128xf32, #tpu.memory_space<vmem>>, %arg8: memref<16x128xf32, #tpu.memory_space<vmem>>) attributes {dimension_semantics = [#tpu.dimension_semantics<parallel>], iteration_bounds = array<i64: 1>, scalar_prefetch = 0 : i64, scratch_operands = 0 : i64, tpu.core_type = #tpu.core_type<tc>, window_params = [{transform_indices = @transform_0, window_bounds = array<i64: 16, 160>}, {pipeline_mode = #tpu.pipeline_mode<synchronous>, transform_indices = @transform_1, window_bounds = array<i64: 160, 256>}, {pipeline_mode = #tpu.pipeline_mode<synchronous>, transform_indices = @transform_2, window_bounds = array<i64: 1, 256>}, {pipeline_mode = #tpu.pipeline_mode<synchronous>, transform_indices = @transform_3, window_bounds = array<i64: 1, 256>}, {pipeline_mode = #tpu.pipeline_mode<synchronous>, transform_indices = @transform_4, window_bounds = array<i64: 1, 256>}, {pipeline_mode = #tpu.pipeline_mode<synchronous>, transform_indices = @transform_5, window_bounds = array<i64: 256, 128>}, {pipeline_mode = #tpu.pipeline_mode<synchronous>, transform_indices = @transform_6, window_bounds = array<i64: 1, 128>}, {transform_indices = @transform_7, window_bounds = array<i64: 16, 128>}]} {
    %c0 = arith.constant 0 : index
    %c0_0 = arith.constant 0 : index
    %0 = vector.load %arg1[%c0, %c0_0] : memref<16x160xbf16, #tpu.memory_space<vmem>>, vector<16x160xbf16>
    %c0_1 = arith.constant 0 : index
    %c0_2 = arith.constant 0 : index
    %1 = vector.load %arg2[%c0_1, %c0_2] : memref<160x256xbf16, #tpu.memory_space<vmem>>, vector<160x256xbf16>
    %cst = arith.constant dense<0.000000e+00> : vector<16x256xf32>
    %2 = tpu.matmul %0, %1, %cst {dimension_numbers = #tpu.dot_dimension_numbers<[1], [0], [0], [1], [0, 0, 1, 1], [], []>} : vector<16x160xbf16>, vector<160x256xbf16>, vector<16x256xf32> -> vector<16x256xf32>
    %c0_3 = arith.constant 0 : index
    %c0_4 = arith.constant 0 : index
    %3 = vector.load %arg3[%c0_3, %c0_4] : memref<1x256xf32, #tpu.memory_space<vmem>>, vector<1x256xf32>
    %4 = vector.broadcast %3 : vector<1x256xf32> to vector<16x256xf32>
    %5 = arith.addf %2, %4 : vector<16x256xf32>
    %cst_5 = arith.constant dense<0.000000e+00> : vector<16xf32>
    %6 = vector.multi_reduction <add>, %5, %cst_5 [1] : vector<16x256xf32> to vector<16xf32>
    %7 = vector.shape_cast %6 : vector<16xf32> to vector<16x1xf32>
    %cst_6 = arith.constant 2.560000e+02 : f32
    %8 = vector.broadcast %cst_6 : f32 to vector<16x1xf32>
    %9 = arith.divf %7, %8 : vector<16x1xf32>
    %10 = vector.broadcast %9 : vector<16x1xf32> to vector<16x256xf32>
    %11 = arith.subf %5, %10 : vector<16x256xf32>
    %12 = arith.mulf %11, %11 : vector<16x256xf32>
    %cst_7 = arith.constant dense<0.000000e+00> : vector<16xf32>
    %13 = vector.multi_reduction <add>, %12, %cst_7 [1] : vector<16x256xf32> to vector<16xf32>
    %14 = vector.shape_cast %13 : vector<16xf32> to vector<16x1xf32>
    %cst_8 = arith.constant 2.560000e+02 : f32
    %15 = vector.broadcast %cst_8 : f32 to vector<16x1xf32>
    %16 = arith.divf %14, %15 : vector<16x1xf32>
    %cst_9 = arith.constant 9.99999974E-6 : f32
    %17 = vector.broadcast %cst_9 : f32 to vector<16x1xf32>
    %18 = arith.addf %16, %17 : vector<16x1xf32>
    %19 = math.rsqrt %18 : vector<16x1xf32>
    %20 = vector.broadcast %19 : vector<16x1xf32> to vector<16x256xf32>
    %21 = arith.mulf %11, %20 : vector<16x256xf32>
    %c0_10 = arith.constant 0 : index
    %c0_11 = arith.constant 0 : index
    %22 = vector.load %arg4[%c0_10, %c0_11] : memref<1x256xf32, #tpu.memory_space<vmem>>, vector<1x256xf32>
    %23 = vector.broadcast %22 : vector<1x256xf32> to vector<16x256xf32>
    %24 = arith.mulf %21, %23 : vector<16x256xf32>
    %c0_12 = arith.constant 0 : index
    %c0_13 = arith.constant 0 : index
    %25 = vector.load %arg5[%c0_12, %c0_13] : memref<1x256xf32, #tpu.memory_space<vmem>>, vector<1x256xf32>
    %26 = vector.broadcast %25 : vector<1x256xf32> to vector<16x256xf32>
    %27 = arith.addf %24, %26 : vector<16x256xf32>
    %cst_14 = arith.constant 0.000000e+00 : f32
    %28 = vector.broadcast %cst_14 : f32 to vector<16x256xf32>
    %29 = arith.maximumf %27, %28 : vector<16x256xf32>
    %30 = arith.truncf %29 : vector<16x256xf32> to vector<16x256xbf16>
    %c0_15 = arith.constant 0 : index
    %c0_16 = arith.constant 0 : index
    %31 = vector.load %arg6[%c0_15, %c0_16] : memref<256x128xbf16, #tpu.memory_space<vmem>>, vector<256x128xbf16>
    %cst_17 = arith.constant dense<0.000000e+00> : vector<16x128xf32>
    %32 = tpu.matmul %30, %31, %cst_17 {dimension_numbers = #tpu.dot_dimension_numbers<[1], [0], [0], [1], [0, 0, 1, 1], [], []>} : vector<16x256xbf16>, vector<256x128xbf16>, vector<16x128xf32> -> vector<16x128xf32>
    %c0_18 = arith.constant 0 : index
    %c0_19 = arith.constant 0 : index
    %33 = vector.load %arg7[%c0_18, %c0_19] : memref<1x128xf32, #tpu.memory_space<vmem>>, vector<1x128xf32>
    %34 = vector.broadcast %33 : vector<1x128xf32> to vector<16x128xf32>
    %35 = arith.addf %32, %34 : vector<16x128xf32>
    %c0_20 = arith.constant 0 : index
    %c0_21 = arith.constant 0 : index
    %36 = vector.load %arg8[%c0_20, %c0_21] : memref<16x128xf32, #tpu.memory_space<vmem>>, vector<16x128xf32>
    tpu.vector_store %arg8[%c0_20, %c0_21], %35 {strides = array<i32>} : memref<16x128xf32, #tpu.memory_space<vmem>>, vector<16x128xf32>,
    return
  }
  func.func @transform_0(%arg0: i32) -> (i32, i32) {
    %c0_i32 = arith.constant 0 : i32
    %c0_i32_0 = arith.constant 0 : i32
    return %arg0, %c0_i32 : i32, i32
  }
  func.func @transform_1(%arg0: i32) -> (i32, i32) {
    %c0_i32 = arith.constant 0 : i32
    %c0_i32_0 = arith.constant 0 : i32
    %c0_i32_1 = arith.constant 0 : i32
    return %c0_i32, %c0_i32_0 : i32, i32
  }
  func.func @transform_2(%arg0: i32) -> (i32, i32) {
    %c0_i32 = arith.constant 0 : i32
    %c0_i32_0 = arith.constant 0 : i32
    %c0_i32_1 = arith.constant 0 : i32
    return %c0_i32, %c0_i32_0 : i32, i32
  }
  func.func @transform_3(%arg0: i32) -> (i32, i32) {
    %c0_i32 = arith.constant 0 : i32
    %c0_i32_0 = arith.constant 0 : i32
    %c0_i32_1 = arith.constant 0 : i32
    return %c0_i32, %c0_i32_0 : i32, i32
  }
  func.func @transform_4(%arg0: i32) -> (i32, i32) {
    %c0_i32 = arith.constant 0 : i32
    %c0_i32_0 = arith.constant 0 : i32
    %c0_i32_1 = arith.constant 0 : i32
    return %c0_i32, %c0_i32_0 : i32, i32
  }
  func.func @transform_5(%arg0: i32) -> (i32, i32) {
    %c0_i32 = arith.constant 0 : i32
    %c0_i32_0 = arith.constant 0 : i32
    %c0_i32_1 = arith.constant 0 : i32
    return %c0_i32, %c0_i32_0 : i32, i32
  }
  func.func @transform_6(%arg0: i32) -> (i32, i32) {
    %c0_i32 = arith.constant 0 : i32
    %c0_i32_0 = arith.constant 0 : i32
    %c0_i32_1 = arith.constant 0 : i32
    return %c0_i32, %c0_i32_0 : i32, i32
  }
  func.func @transform_7(%arg0: i32) -> (i32, i32) {
    %c0_i32 = arith.constant 0 : i32
    %c0_i32_0 = arith.constant 0 : i32
    return %arg0, %c0_i32 : i32, i32
  }
}

</mosaic_0001>

<llo_original>
// kernel: tpu_custom_call.1
$region0: #{tpu_custom_call.1}
  #allocation0 [shape = 'u32[]', space=smem, size = 0x4, offset = 0x4, fixed_abs, tag = 'smem constant byte address 0x4 - core index']
  #allocation1 [shape = 'u32[144,128]{1,0:T(1,128)}', space=vmem, size = 0x12000, scoped, tag = 'internal scratch']
  %s0 = inlined_call_operand.hbm [shape: bf16[16,160], index: 0, kind: input, shape index: {}]
  %s1 = inlined_call_operand.hbm [shape: bf16[160,256], index: 1, kind: input, shape index: {}]
  %s2 = inlined_call_operand.vmem [shape: f32[1,256], index: 2, kind: input, shape index: {}]
  %s3 = inlined_call_operand.vmem [shape: f32[1,256], index: 3, kind: input, shape index: {}]
  %s4 = inlined_call_operand.vmem [shape: f32[1,256], index: 4, kind: input, shape index: {}]
  %s5 = inlined_call_operand.hbm [shape: bf16[256,128], index: 5, kind: input, shape index: {}]
  %s6 = inlined_call_operand.vmem [shape: f32[1,128], index: 6, kind: input, shape index: {}]
  %s7 = inlined_call_operand.hbm [shape: f32[16,128], index: 7, kind: output, shape index: {}]
  %s8 = sld [smem:[#allocation0]]
  $region50: #{tpu_custom_call.1} parent=0
    _
  %s10 = ssub.s32 1, %s8
  %s11 = scalar_select 0, %s10, %s8
  $region1: #{tpu_custom_call.1} parent=0
    #allocation2 [shape = 'u8[8192]{0}', space=vmem, size = 0x2000, scoped, tag = 'input window, operand 0, single buffered']
    #allocation3 [shape = 's32[1]{0}', space=sflag, size = 0x4, scoped, tag = 'scoped memory for tpu_custom_call.1']
    #allocation4 [shape = 's32[1]{0}', space=sflag, size = 0x4, scoped, tag = 'scoped memory for tpu_custom_call.1']
    #allocation5 [shape = 'u8[81920]{0}', space=vmem, size = 0x14000, scoped, tag = 'input window, operand 1, single buffered']
    #allocation6 [shape = 's32[1]{0}', space=sflag, size = 0x4, scoped, tag = 'scoped memory for tpu_custom_call.1']
    #allocation7 [shape = 'u8[65536]{0}', space=vmem, size = 0x10000, scoped, tag = 'input window, operand 5, single buffered']
    #allocation8 [shape = 'u8[8192]{0}', space=vmem, size = 0x2000, scoped, tag = 'output window, operand 0, single buffered']
    %12 = vsyncpa [#allocation3], 0
    %13 = vsyncpa [#allocation6], 0
    %14 = vsyncpa [#allocation4], 0
    // Predicated region
    $region2: #{tpu_custom_call.1} parent=1 // pred_check
      _
    $region3: #{tpu_custom_call.1} parent=1 // pred_check_branch
      %16 = sbr.rel (0) target = $region5
    $region4: #{tpu_custom_call.1} parent=1 // pred_region
      %s18 = ssub.s32 256, 256
      %19 = vsyncadd [#allocation3], %s18
      %s20 = sshll.u32 [#allocation2], 4
      %s21 = int_to_ptr.vmem [resolvable:$true] %s20
      %26 = dma.hbm_to_vmem [thread:$0]  %s0, 256, %s21, [#allocation3], 128, 128, 8
    $region5: #{tpu_custom_call.1} parent=1 // pred_fallthru
      _
    // Predicated region
    $region6: #{tpu_custom_call.1} parent=1 // pred_check
      _
    $region7: #{tpu_custom_call.1} parent=1 // pred_check_branch
      %28 = sbr.rel (0) target = $region9
    $region8: #{tpu_custom_call.1} parent=1 // pred_region
      %s30 = ssub.s32 2560, 2560
      %31 = vsyncadd [#allocation6], %s30
      %s32 = sshll.u32 [#allocation5], 4
      %s33 = int_to_ptr.vmem [resolvable:$true] %s32
      %38 = dma.hbm_to_vmem [thread:$0]  %s1, 2560, %s33, [#allocation6], 128, 128, 8
    $region9: #{tpu_custom_call.1} parent=1 // pred_fallthru
      _
    // Predicated region
    $region10: #{tpu_custom_call.1} parent=1 // pred_check
      _
    $region11: #{tpu_custom_call.1} parent=1 // pred_check_branch
      %40 = sbr.rel (0) target = $region13
    $region12: #{tpu_custom_call.1} parent=1 // pred_region
      _
    $region13: #{tpu_custom_call.1} parent=1 // pred_fallthru
      _
    // Predicated region
    $region14: #{tpu_custom_call.1} parent=1 // pred_check
      _
    $region15: #{tpu_custom_call.1} parent=1 // pred_check_branch
      %42 = sbr.rel (0) target = $region17
    $region16: #{tpu_custom_call.1} parent=1 // pred_region
      _
    $region17: #{tpu_custom_call.1} parent=1 // pred_fallthru
      _
    // Predicated region
    $region18: #{tpu_custom_call.1} parent=1 // pred_check
      _
    $region19: #{tpu_custom_call.1} parent=1 // pred_check_branch
      %44 = sbr.rel (0) target = $region21
    $region20: #{tpu_custom_call.1} parent=1 // pred_region
      _
    $region21: #{tpu_custom_call.1} parent=1 // pred_fallthru
      _
    // Predicated region
    $region22: #{tpu_custom_call.1} parent=1 // pred_check
      _
    $region23: #{tpu_custom_call.1} parent=1 // pred_check_branch
      %46 = sbr.rel (0) target = $region25
    $region24: #{tpu_custom_call.1} parent=1 // pred_region
      %s48 = ssub.s32 2048, 2048
      %49 = vsyncadd [#allocation6], %s48
      %s50 = sshll.u32 [#allocation7], 4
      %s51 = int_to_ptr.vmem [resolvable:$true] %s50
      %56 = dma.hbm_to_vmem [thread:$0]  %s5, 2048, %s51, [#allocation6], 64, 64, 4
    $region25: #{tpu_custom_call.1} parent=1 // pred_fallthru
      _
    // Predicated region
    $region26: #{tpu_custom_call.1} parent=1 // pred_check
      _
    $region27: #{tpu_custom_call.1} parent=1 // pred_check_branch
      %58 = sbr.rel (0) target = $region29
    $region28: #{tpu_custom_call.1} parent=1 // pred_region
      _
    $region29: #{tpu_custom_call.1} parent=1 // pred_fallthru
      _
    // Predicated region
    $region30: #{tpu_custom_call.1} parent=1 // pred_check
      _
    $region31: #{tpu_custom_call.1} parent=1 // pred_check_branch
      %60 = sbr.rel (0) target = $region33
    $region32: #{tpu_custom_call.1} parent=1 // pred_region
      %61 = dma.done [#allocation3], 256
    $region33: #{tpu_custom_call.1} parent=1 // pred_fallthru
      _
    // Predicated region
    $region34: #{tpu_custom_call.1} parent=1 // pred_check
      _
    $region35: #{tpu_custom_call.1} parent=1 // pred_check_branch
      %63 = sbr.rel (0) target = $region37
    $region36: #{tpu_custom_call.1} parent=1 // pred_region
      %64 = dma.done [#allocation6], 2560
    $region37: #{tpu_custom_call.1} parent=1 // pred_fallthru
      _
    // Predicated region
    $region38: #{tpu_custom_call.1} parent=1 // pred_check
      _
    $region39: #{tpu_custom_call.1} parent=1 // pred_check_branch
      %66 = sbr.rel (0) target = $region41
    $region40: #{tpu_custom_call.1} parent=1 // pred_region
      %67 = dma.done [#allocation6], 2048
    $region41: #{tpu_custom_call.1} parent=1 // pred_fallthru
      _
    %v69 = vld [vmem:[#allocation2] sm:$0xff]
    %v70 = vld [vmem:[#allocation2 + $0x8] sm:$0xff]
    %v71 = vld [vmem:[#allocation5] sm:$0xff]
    %v72 = vld [vmem:[#allocation5 + $0x8] sm:$0xff]
    %v73 = vld [vmem:[#allocation5 + $0x10] sm:$0xff]
    %v74 = vld [vmem:[#allocation5 + $0x18] sm:$0xff]
    %v75 = vld [vmem:[#allocation5 + $0x20] sm:$0xff]
    %v76 = vld [vmem:[#allocation5 + $0x28] sm:$0xff]
    %v77 = vld [vmem:[#allocation5 + $0x30] sm:$0xff]
    %v78 = vld [vmem:[#allocation5 + $0x38] sm:$0xff]
    %v79 = vld [vmem:[#allocation5 + $0x40] sm:$0xff]
    %v80 = vld [vmem:[#allocation5 + $0x48] sm:$0xff]
    %v81 = vld [vmem:[#allocation5 + $0x50] sm:$0xff]
    %v82 = vld [vmem:[#allocation5 + $0x58] sm:$0xff]
    %v83 = vld [vmem:[#allocation5 + $0x60] sm:$0xff]
    %v84 = vld [vmem:[#allocation5 + $0x68] sm:$0xff]
    %v85 = vld [vmem:[#allocation5 + $0x70] sm:$0xff]
    %v86 = vld [vmem:[#allocation5 + $0x78] sm:$0xff]
    %v87 = vld [vmem:[#allocation5 + $0x80] sm:$0xff]
    %v88 = vld [vmem:[#allocation5 + $0x88] sm:$0xff]
    %v89 = vld [vmem:[#allocation5 + $0x90] sm:$0xff]
    %v90 = vld [vmem:[#allocation5 + $0x98] sm:$0xff]
    %v91 = vld [vmem:[%s2] sm:$0x3]
    %v93 = vlaneseq
    %v94 = vshrl.u32 %v93, 7
    %v95 = vsub.s32 0, %v94
    %v96 = vrot.slane %v91, %v95
    %v97 = vlaneseq
    %v98 = vshrl.u32 %v97, 7
    %v99 = vsub.s32 1, %v98
    %v100 = vrot.slane %v91, %v99
    %v105 = vunpack.c.l.b16 %v69
    %v106 = vunpack.c.h.b16 %v69
    %v107 = vunpack.c.l.b16 %v70
    %v108 = vunpack.c.h.b16 %v70
    %v109 = vpack.c.b16 %v107, %v105
    %v110 = vpack.c.b16 %v108, %v106
    %v132 = vunpack.c.l.b16 %v71
    %v133 = vunpack.c.h.b16 %v71
    %v134 = vunpack.c.l.b16 %v72
    %v135 = vunpack.c.h.b16 %v72
    %v136 = vunpack.c.l.b16 %v73
    %v137 = vunpack.c.h.b16 %v73
    %v138 = vunpack.c.l.b16 %v74
    %v139 = vunpack.c.h.b16 %v74
    %v140 = vunpack.c.l.b16 %v75
    %v141 = vunpack.c.h.b16 %v75
    %v142 = vunpack.c.l.b16 %v76
    %v143 = vunpack.c.h.b16 %v76
    %v144 = vunpack.c.l.b16 %v77
    %v145 = vunpack.c.h.b16 %v77
    %v146 = vunpack.c.l.b16 %v78
    %v147 = vunpack.c.h.b16 %v78
    %v148 = vunpack.c.l.b16 %v79
    %v149 = vunpack.c.h.b16 %v79
    %v150 = vunpack.c.l.b16 %v80
    %v151 = vunpack.c.h.b16 %v80
    %v152 = vunpack.c.l.b16 %v81
    %v153 = vunpack.c.h.b16 %v81
    %v154 = vunpack.c.l.b16 %v82
    %v155 = vunpack.c.h.b16 %v82
    %v156 = vunpack.c.l.b16 %v83
    %v157 = vunpack.c.h.b16 %v83
    %v158 = vunpack.c.l.b16 %v84
    %v159 = vunpack.c.h.b16 %v84
    %v160 = vunpack.c.l.b16 %v85
    %v161 = vunpack.c.h.b16 %v85
    %v162 = vunpack.c.l.b16 %v86
    %v163 = vunpack.c.h.b16 %v86
    %v164 = vunpack.c.l.b16 %v87
    %v165 = vunpack.c.h.b16 %v87
    %v166 = vunpack.c.l.b16 %v88
    %v167 = vunpack.c.h.b16 %v88
    %v168 = vunpack.c.l.b16 %v89
    %v169 = vunpack.c.h.b16 %v89
    %v170 = vunpack.c.l.b16 %v90
    %v171 = vunpack.c.h.b16 %v90
    %v172 = vpack.c.b16 %v134, %v132
    %v173 = vpack.c.b16 %v135, %v133
    %v174 = vpack.c.b16 %v138, %v136
    %v175 = vpack.c.b16 %v139, %v137
    %v176 = vpack.c.b16 %v142, %v140
    %v177 = vpack.c.b16 %v143, %v141
    %v178 = vpack.c.b16 %v146, %v144
    %v179 = vpack.c.b16 %v147, %v145
    %v180 = vpack.c.b16 %v150, %v148
    %v181 = vpack.c.b16 %v151, %v149
    %v182 = vpack.c.b16 %v154, %v152
    %v183 = vpack.c.b16 %v155, %v153
    %v184 = vpack.c.b16 %v158, %v156
    %v185 = vpack.c.b16 %v159, %v157
    %v186 = vpack.c.b16 %v162, %v160
    %v187 = vpack.c.b16 %v163, %v161
    %v188 = vpack.c.b16 %v166, %v164
    %v189 = vpack.c.b16 %v167, %v165
    %v190 = vpack.c.b16 %v170, %v168
    %v191 = vpack.c.b16 %v171, %v169
    %vm212 = vcmask 261120
    %v214 = vsel %vm212, %v110, 0
    %216 = vmatprep.subr.bf16.mxu0 %v187
    %217 = vmatpush1.bf16.msra.mxu0 %v186
    %218 = vmatprep.subr.bf16.mxu0 %v185
    %219 = vmatpush1.bf16.msra.mxu0 %v184
    %220 = vmatprep.subr.bf16.mxu0 %v183
    %221 = vmatpush1.bf16.msra.mxu0 %v182
    %222 = vmatprep.subr.bf16.mxu0 %v181
    %223 = vmatpush1.bf16.msra.mxu0 %v180
    %224 = vmatprep.subr.bf16.mxu0 %v179
    %225 = vmatpush1.bf16.msra.mxu0 %v178
    %226 = vmatprep.subr.bf16.mxu0 %v177
    %227 = vmatpush1.bf16.msra.mxu0 %v176
    %228 = vmatprep.subr.bf16.mxu0 %v175
    %229 = vmatpush1.bf16.msra.mxu0 %v174
    %230 = vmatprep.subr.bf16.mxu0 %v173
    %231 = vmatpush1.bf16.msra.mxu0 %v172
    %232 = vmatprep.subr.bf16.mxu0 0
    %233 = vmatpush2.bf16.msra.mxu0 0
    %234 = vmatprep.subr.bf16.mxu0 0
    %235 = vmatpush2.bf16.msra.mxu0 0
    %236 = vmatprep.subr.bf16.mxu0 0
    %237 = vmatpush2.bf16.msra.mxu0 0
    %238 = vmatprep.subr.bf16.mxu0 0
    %239 = vmatpush2.bf16.msra.mxu0 0
    %240 = vmatprep.subr.bf16.mxu0 0
    %241 = vmatpush2.bf16.msra.mxu0 0
    %242 = vmatprep.subr.bf16.mxu0 0
    %243 = vmatpush2.bf16.msra.mxu0 0
    %244 = vmatprep.subr.bf16.mxu0 %v191
    %245 = vmatpush2.bf16.msra.mxu0 %v190
    %246 = vmatprep.subr.bf16.mxu0 %v189
    %247 = vmatpush2.bf16.msra.mxu0 %v188
    %248 = vmatprep.mubr.bf16.mxu0 %v214
    %249 = vmatmul.mubr.bf16.gmra.mxu0 %v109
    %v250 = vpop.f32.mrf.mxu0
    %v251 = vadd.f32 %v96, %v250
    %v252 = vpop.f32.mrf.mxu0
    %v253 = vadd.f32 %v100, %v252
    %v254 = vpop.f32.mrf.mxu0
    %v255 = vadd.f32 %v96, %v254
    %v256 = vpop.f32.mrf.mxu0
    %v257 = vadd.f32 %v100, %v256
    %258 = vdwg.mxu0
    %v259 = vadd.f32 %v251, %v253
    %260 = vadd.xlane.f32.xlu0 %v259
    %v261 = vpop.xlane.xlu0 %260
    %v262 = vadd.f32 %v255, %v257
    %263 = vadd.xlane.f32.xlu0 %v262
    %v264 = vpop.xlane.xlu0 %263
    %v265 = vrcp.pop 256.0
    %v266 = vmul.f32 %v261, %v265
    %v267 = vmul.f32 %v264, %v265
    %v268 = vsub.f32 %v251, %v266
    %v269 = vsub.f32 %v253, %v266
    %v270 = vsub.f32 %v255, %v267
    %v271 = vsub.f32 %v257, %v267
    %v272 = vmul.f32 %v268, %v268
    %v273 = vmul.f32 %v269, %v269
    %v274 = vmul.f32 %v270, %v270
    %v275 = vmul.f32 %v271, %v271
    %v276 = vadd.f32 %v272, %v273
    %277 = vadd.xlane.f32.xlu0 %v276
    %v278 = vpop.xlane.xlu0 %277
    %v279 = vadd.f32 %v274, %v275
    %280 = vadd.xlane.f32.xlu0 %v279
    %v281 = vpop.xlane.xlu0 %280
    %v282 = vmul.f32 %v278, %v265
    %v283 = vmul.f32 %v281, %v265
    %v284 = vadd.f32 %v282, 1e-05
    %v285 = vadd.f32 %v283, 1e-05
    %v286 = vrsqrt.pop %v284
    %v287 = vrsqrt.pop %v285
    %v288 = vmul.f32 %v268, %v286
    %v289 = vmul.f32 %v269, %v286
    %v290 = vmul.f32 %v270, %v287
    %v291 = vmul.f32 %v271, %v287
    %v292 = vld [vmem:[%s3] sm:$0x3]
    %v294 = vlaneseq
    %v295 = vshrl.u32 %v294, 7
    %v296 = vsub.s32 0, %v295
    %v297 = vrot.slane %v292, %v296
    %v298 = vlaneseq
    %v299 = vshrl.u32 %v298, 7
    %v300 = vsub.s32 1, %v299
    %v301 = vrot.slane %v292, %v300
    %v304 = vmul.f32 %v288, %v297
    %v305 = vmul.f32 %v289, %v301
    %v306 = vmul.f32 %v290, %v297
    %v307 = vmul.f32 %v291, %v301
    %v308 = vld [vmem:[%s4] sm:$0x3]
    %v310 = vlaneseq
    %v311 = vshrl.u32 %v310, 7
    %v312 = vsub.s32 0, %v311
    %v313 = vrot.slane %v308, %v312
    %v314 = vlaneseq
    %v315 = vshrl.u32 %v314, 7
    %v316 = vsub.s32 1, %v315
    %v317 = vrot.slane %v308, %v316
    %v320 = vadd.f32 %v304, %v313
    %v321 = vadd.f32 %v305, %v317
    %v322 = vadd.f32 %v306, %v313
    %v323 = vadd.f32 %v307, %v317
    %v324 = vmax.f32 %v320, 0.0
    %v325 = vmax.f32 %v321, 0.0
    %v326 = vmax.f32 %v322, 0.0
    %v327 = vmax.f32 %v323, 0.0
    %v328 = vpack.c.bf16 %v326, %v324
    %v329 = vpack.c.bf16 %v327, %v325
    %v330 = vld [vmem:[#allocation7] sm:$0xf]
    %v331 = vld [vmem:[#allocation7 + $0x4] sm:$0xf]
    %v332 = vld [vmem:[#allocation7 + $0x8] sm:$0xf]
    %v333 = vld [vmem:[#allocation7 + $0xc] sm:$0xf]
    %v334 = vld [vmem:[#allocation7 + $0x10] sm:$0xf]
    %v335 = vld [vmem:[#allocation7 + $0x14] sm:$0xf]
    %v336 = vld [vmem:[#allocation7 + $0x18] sm:$0xf]
    %v337 = vld [vmem:[#allocation7 + $0x1c] sm:$0xf]
    %v338 = vld [vmem:[#allocation7 + $0x20] sm:$0xf]
    %v339 = vld [vmem:[#allocation7 + $0x24] sm:$0xf]
    %v340 = vld [vmem:[#allocation7 + $0x28] sm:$0xf]
    %v341 = vld [vmem:[#allocation7 + $0x2c] sm:$0xf]
    %v342 = vld [vmem:[#allocation7 + $0x30] sm:$0xf]
    %v343 = vld [vmem:[#allocation7 + $0x34] sm:$0xf]
    %v344 = vld [vmem:[#allocation7 + $0x38] sm:$0xf]
    %v345 = vld [vmem:[#allocation7 + $0x3c] sm:$0xf]
    %v346 = vld [vmem:[#allocation7 + $0x40] sm:$0xf]
    %v347 = vld [vmem:[#allocation7 + $0x44] sm:$0xf]
    %v348 = vld [vmem:[#allocation7 + $0x48] sm:$0xf]
    %v349 = vld [vmem:[#allocation7 + $0x4c] sm:$0xf]
    %v350 = vld [vmem:[#allocation7 + $0x50] sm:$0xf]
    %v351 = vld [vmem:[#allocation7 + $0x54] sm:$0xf]
    %v352 = vld [vmem:[#allocation7 + $0x58] sm:$0xf]
    %v353 = vld [vmem:[#allocation7 + $0x5c] sm:$0xf]
    %v354 = vld [vmem:[#allocation7 + $0x60] sm:$0xf]
    %v355 = vld [vmem:[#allocation7 + $0x64] sm:$0xf]
    %v356 = vld [vmem:[#allocation7 + $0x68] sm:$0xf]
    %v357 = vld [vmem:[#allocation7 + $0x6c] sm:$0xf]
    %v358 = vld [vmem:[#allocation7 + $0x70] sm:$0xf]
    %v359 = vld [vmem:[#allocation7 + $0x74] sm:$0xf]
    %v360 = vld [vmem:[#allocation7 + $0x78] sm:$0xf]
    %v361 = vld [vmem:[#allocation7 + $0x7c] sm:$0xf]
    %v362 = vld [vmem:[%s6] sm:$0x1]
    %v364 = vlaneseq
    %v365 = vshrl.u32 %v364, 7
    %v366 = vsub.s32 0, %v365
    %v367 = vrot.slane %v362, %v366
    %v401 = vunpack.c.l.b16 %v330
    %v402 = vunpack.c.l.b16 %v331
    %v403 = vunpack.c.l.b16 %v332
    %v404 = vunpack.c.l.b16 %v333
    %v405 = vunpack.c.l.b16 %v334
    %v406 = vunpack.c.l.b16 %v335
    %v407 = vunpack.c.l.b16 %v336
    %v408 = vunpack.c.l.b16 %v337
    %v409 = vunpack.c.l.b16 %v338
    %v410 = vunpack.c.l.b16 %v339
    %v411 = vunpack.c.l.b16 %v340
    %v412 = vunpack.c.l.b16 %v341
    %v413 = vunpack.c.l.b16 %v342
    %v414 = vunpack.c.l.b16 %v343
    %v415 = vunpack.c.l.b16 %v344
    %v416 = vunpack.c.l.b16 %v345
    %v417 = vunpack.c.l.b16 %v346
    %v418 = vunpack.c.l.b16 %v347
    %v419 = vunpack.c.l.b16 %v348
    %v420 = vunpack.c.l.b16 %v349
    %v421 = vunpack.c.l.b16 %v350
    %v422 = vunpack.c.l.b16 %v351
    %v423 = vunpack.c.l.b16 %v352
    %v424 = vunpack.c.l.b16 %v353
    %v425 = vunpack.c.l.b16 %v354
    %v426 = vunpack.c.l.b16 %v355
    %v427 = vunpack.c.l.b16 %v356
    %v428 = vunpack.c.l.b16 %v357
    %v429 = vunpack.c.l.b16 %v358
    %v430 = vunpack.c.l.b16 %v359
    %v431 = vunpack.c.l.b16 %v360
    %v432 = vunpack.c.l.b16 %v361
    %v433 = vpack.c.b16 %v402, %v401
    %v434 = vpack.c.b16 %v404, %v403
    %v435 = vpack.c.b16 %v406, %v405
    %v436 = vpack.c.b16 %v408, %v407
    %v437 = vpack.c.b16 %v410, %v409
    %v438 = vpack.c.b16 %v412, %v411
    %v439 = vpack.c.b16 %v414, %v413
    %v440 = vpack.c.b16 %v416, %v415
    %v441 = vpack.c.b16 %v418, %v417
    %v442 = vpack.c.b16 %v420, %v419
    %v443 = vpack.c.b16 %v422, %v421
    %v444 = vpack.c.b16 %v424, %v423
    %v445 = vpack.c.b16 %v426, %v425
    %v446 = vpack.c.b16 %v428, %v427
    %v447 = vpack.c.b16 %v430, %v429
    %v448 = vpack.c.b16 %v432, %v431
    %465 = vmatprep.subr.bf16.mxu0 0
    %466 = vmatpush1.bf16.msra.mxu0 %v440
    %467 = vmatprep.subr.bf16.mxu0 0
    %468 = vmatpush1.bf16.msra.mxu0 %v439
    %469 = vmatprep.subr.bf16.mxu0 0
    %470 = vmatpush1.bf16.msra.mxu0 %v438
    %471 = vmatprep.subr.bf16.mxu0 0
    %472 = vmatpush1.bf16.msra.mxu0 %v437
    %473 = vmatprep.subr.bf16.mxu0 0
    %474 = vmatpush1.bf16.msra.mxu0 %v436
    %475 = vmatprep.subr.bf16.mxu0 0
    %476 = vmatpush1.bf16.msra.mxu0 %v435
    %477 = vmatprep.subr.bf16.mxu0 0
    %478 = vmatpush1.bf16.msra.mxu0 %v434
    %479 = vmatprep.subr.bf16.mxu0 0
    %480 = vmatpush1.bf16.msra.mxu0 %v433
    %481 = vmatprep.subr.bf16.mxu0 0
    %482 = vmatpush2.bf16.msra.mxu0 %v448
    %483 = vmatprep.subr.bf16.mxu0 0
    %484 = vmatpush2.bf16.msra.mxu0 %v447
    %485 = vmatprep.subr.bf16.mxu0 0
    %486 = vmatpush2.bf16.msra.mxu0 %v446
    %487 = vmatprep.subr.bf16.mxu0 0
    %488 = vmatpush2.bf16.msra.mxu0 %v445
    %489 = vmatprep.subr.bf16.mxu0 0
    %490 = vmatpush2.bf16.msra.mxu0 %v444
    %491 = vmatprep.subr.bf16.mxu0 0
    %492 = vmatpush2.bf16.msra.mxu0 %v443
    %493 = vmatprep.subr.bf16.mxu0 0
    %494 = vmatpush2.bf16.msra.mxu0 %v442
    %495 = vmatprep.subr.bf16.mxu0 0
    %496 = vmatpush2.bf16.msra.mxu0 %v441
    %497 = vmatprep.mubr.bf16.mxu0 %v329
    %498 = vmatmul.mubr.bf16.gmra.mxu0 %v328
    %v499 = vpop.f32.mrf.mxu0
    %v500 = vadd.f32 %v367, %v499
    %v501 = vpop.f32.mrf.mxu0
    %v502 = vpop.f32.mrf.mxu0
    %v503 = vadd.f32 %v367, %v502
    %v504 = vpop.f32.mrf.mxu0
    %505 = vdwg.mxu0
    %506 = vst [vmem:[#allocation8] sm:$0xff] %v500
    %507 = vst [vmem:[#allocation8 + $0x8] sm:$0xff] %v503
    // Predicated region
    $region42: #{tpu_custom_call.1} parent=1 // pred_check
      _
    $region43: #{tpu_custom_call.1} parent=1 // pred_check_branch
      %509 = sbr.rel (0) target = $region45
    $region44: #{tpu_custom_call.1} parent=1 // pred_region
      %s511 = ssub.s32 256, 256
      %512 = vsyncadd [#allocation4], %s511
      %s513 = sshll.u32 [#allocation8], 4
      %s514 = int_to_ptr.vmem [resolvable:$true] %s513
      %519 = dma.vmem_to_hbm [thread:$0]  %s514, 256, %s7, [#allocation4], 128, 128, 8
    $region45: #{tpu_custom_call.1} parent=1 // pred_fallthru
      _
    // Predicated region
    $region46: #{tpu_custom_call.1} parent=1 // pred_check
      _
    $region47: #{tpu_custom_call.1} parent=1 // pred_check_branch
      %521 = sbr.rel (0) target = $region49
    $region48: #{tpu_custom_call.1} parent=1 // pred_region
      %522 = dma.done [#allocation4], 256
    $region49: #{tpu_custom_call.1} parent=1 // pred_fallthru
      _
    %523 = vsyncpa [#allocation3], 1
    %524 = vsyncpa [#allocation6], 1
    %525 = vsyncpa [#allocation4], 1

// kernel: tpu_custom_call.1
$region0: #{tpu_custom_call.1}
  #allocation0 [shape = 'u32[]', space=smem, size = 0x4, offset = 0x4, fixed_abs, tag = 'smem constant byte address 0x4 - core index']
  #allocation1 [shape = 'u32[144,128]{1,0:T(1,128)}', space=vmem, size = 0x12000, scoped, tag = 'internal scratch']
  %s0 = inlined_call_operand.hbm [shape: bf16[16,160], index: 0, kind: input, shape index: {}]
  %s1 = inlined_call_operand.hbm [shape: bf16[160,256], index: 1, kind: input, shape index: {}]
  %s2 = inlined_call_operand.vmem [shape: f32[1,256], index: 2, kind: input, shape index: {}]
  %s3 = inlined_call_operand.vmem [shape: f32[1,256], index: 3, kind: input, shape index: {}]
  %s4 = inlined_call_operand.vmem [shape: f32[1,256], index: 4, kind: input, shape index: {}]
  %s5 = inlined_call_operand.hbm [shape: bf16[256,128], index: 5, kind: input, shape index: {}]
  %s6 = inlined_call_operand.vmem [shape: f32[1,128], index: 6, kind: input, shape index: {}]
  %s7 = inlined_call_operand.hbm [shape: f32[16,128], index: 7, kind: output, shape index: {}]
  %s8 = sld [smem:[#allocation0]]
  $region50: #{tpu_custom_call.1} parent=0
    _
  %s10 = ssub.s32 1, %s8
  %s11 = scalar_select 0, %s10, %s8
  $region1: #{tpu_custom_call.1} parent=0
    #allocation2 [shape = 'u8[8192]{0}', space=vmem, size = 0x2000, scoped, tag = 'input window, operand 0, single buffered']
    #allocation3 [shape = 's32[1]{0}', space=sflag, size = 0x4, scoped, tag = 'scoped memory for tpu_custom_call.1']
    #allocation4 [shape = 's32[1]{0}', space=sflag, size = 0x4, scoped, tag = 'scoped memory for tpu_custom_call.1']
    #allocation5 [shape = 'u8[81920]{0}', space=vmem, size = 0x14000, scoped, tag = 'input window, operand 1, single buffered']
    #allocation6 [shape = 's32[1]{0}', space=sflag, size = 0x4, scoped, tag = 'scoped memory for tpu_custom_call.1']
    #allocation7 [shape = 'u8[65536]{0}', space=vmem, size = 0x10000, scoped, tag = 'input window, operand 5, single buffered']
    #allocation8 [shape = 'u8[8192]{0}', space=vmem, size = 0x2000, scoped, tag = 'output window, operand 0, single buffered']
    %12 = vsyncpa [#allocation3], 0
    %13 = vsyncpa [#allocation6], 0
    %14 = vsyncpa [#allocation4], 0
    // Predicated region
    $region2: #{tpu_custom_call.1} parent=1 // pred_check
      _
    $region3: #{tpu_custom_call.1} parent=1 // pred_check_branch
      %16 = sbr.rel (0) target = $region5
    $region4: #{tpu_custom_call.1} parent=1 // pred_region
      %s18 = ssub.s32 256, 256
      %19 = vsyncadd [#allocation3], %s18
      %s20 = sshll.u32 [#allocation2], 4
      %s21 = int_to_ptr.vmem [resolvable:$true] %s20
      %26 = dma.hbm_to_vmem [thread:$0]  %s0, 256, %s21, [#allocation3], 128, 128, 8
    $region5: #{tpu_custom_call.1} parent=1 // pred_fallthru
      _
    // Predicated region
    $region6: #{tpu_custom_call.1} parent=1 // pred_check
      _
    $region7: #{tpu_custom_call.1} parent=1 // pred_check_branch
      %28 = sbr.rel (0) target = $region9
    $region8: #{tpu_custom_call.1} parent=1 // pred_region
      %s30 = ssub.s32 2560, 2560
      %31 = vsyncadd [#allocation6], %s30
      %s32 = sshll.u32 [#allocation5], 4
      %s33 = int_to_ptr.vmem [resolvable:$true] %s32
      %38 = dma.hbm_to_vmem [thread:$0]  %s1, 2560, %s33, [#allocation6], 128, 128, 8
    $region9: #{tpu_custom_call.1} parent=1 // pred_fallthru
      _
    // Predicated region
    $region10: #{tpu_custom_call.1} parent=1 // pred_check
      _
    $region11: #{tpu_custom_call.1} parent=1 // pred_check_branch
      %40 = sbr.rel (0) target = $region13
    $region12: #{tpu_custom_call.1} parent=1 // pred_region
      _
    $region13: #{tpu_custom_call.1} parent=1 // pred_fallthru
      _
    // Predicated region
    $region14: #{tpu_custom_call.1} parent=1 // pred_check
      _
    $region15: #{tpu_custom_call.1} parent=1 // pred_check_branch
      %42 = sbr.rel (0) target = $region17
    $region16: #{tpu_custom_call.1} parent=1 // pred_region
      _
    $region17: #{tpu_custom_call.1} parent=1 // pred_fallthru
      _
    // Predicated region
    $region18: #{tpu_custom_call.1} parent=1 // pred_check
      _
    $region19: #{tpu_custom_call.1} parent=1 // pred_check_branch
      %44 = sbr.rel (0) target = $region21
    $region20: #{tpu_custom_call.1} parent=1 // pred_region
      _
    $region21: #{tpu_custom_call.1} parent=1 // pred_fallthru
      _
    // Predicated region
    $region22: #{tpu_custom_call.1} parent=1 // pred_check
      _
    $region23: #{tpu_custom_call.1} parent=1 // pred_check_branch
      %46 = sbr.rel (0) target = $region25
    $region24: #{tpu_custom_call.1} parent=1 // pred_region
      %s48 = ssub.s32 2048, 2048
      %49 = vsyncadd [#allocation6], %s48
      %s50 = sshll.u32 [#allocation7], 4
      %s51 = int_to_ptr.vmem [resolvable:$true] %s50
      %56 = dma.hbm_to_vmem [thread:$0]  %s5, 2048, %s51, [#allocation6], 64, 64, 4
    $region25: #{tpu_custom_call.1} parent=1 // pred_fallthru
      _
    // Predicated region
    $region26: #{tpu_custom_call.1} parent=1 // pred_check
      _
    $region27: #{tpu_custom_call.1} parent=1 // pred_check_branch
      %58 = sbr.rel (0) target = $region29
    $region28: #{tpu_custom_call.1} parent=1 // pred_region
      _
    $region29: #{tpu_custom_call.1} parent=1 // pred_fallthru
      _
    // Predicated region
    $region30: #{tpu_custom_call.1} parent=1 // pred_check
      _
    $region31: #{tpu_custom_call.1} parent=1 // pred_check_branch
      %60 = sbr.rel (0) target = $region33
    $region32: #{tpu_custom_call.1} parent=1 // pred_region
      %61 = dma.done [#allocation3], 256
    $region33: #{tpu_custom_call.1} parent=1 // pred_fallthru
      _
    // Predicated region
    $region34: #{tpu_custom_call.1} parent=1 // pred_check
      _
    $region35: #{tpu_custom_call.1} parent=1 // pred_check_branch
      %63 = sbr.rel (0) target = $region37
    $region36: #{tpu_custom_call.1} parent=1 // pred_region
      %64 = dma.done [#allocation6], 2560
    $region37: #{tpu_custom_call.1} parent=1 // pred_fallthru
      _
    // Predicated region
    $region38: #{tpu_custom_call.1} parent=1 // pred_check
      _
    $region39: #{tpu_custom_call.1} parent=1 // pred_check_branch
      %66 = sbr.rel (0) target = $region41
    $region40: #{tpu_custom_call.1} parent=1 // pred_region
      %67 = dma.done [#allocation6], 2048
    $region41: #{tpu_custom_call.1} parent=1 // pred_fallthru
      _
    %v69 = vld [vmem:[#allocation2] sm:$0xff]
    %v70 = vld [vmem:[#allocation2 + $0x8] sm:$0xff]
    %v71 = vld [vmem:[#allocation5] sm:$0xff]
    %v72 = vld [vmem:[#allocation5 + $0x8] sm:$0xff]
    %v73 = vld [vmem:[#allocation5 + $0x10] sm:$0xff]
    %v74 = vld [vmem:[#allocation5 + $0x18] sm:$0xff]
    %v75 = vld [vmem:[#allocation5 + $0x20] sm:$0xff]
    %v76 = vld [vmem:[#allocation5 + $0x28] sm:$0xff]
    %v77 = vld [vmem:[#allocation5 + $0x30] sm:$0xff]
    %v78 = vld [vmem:[#allocation5 + $0x38] sm:$0xff]
    %v79 = vld [vmem:[#allocation5 + $0x40] sm:$0xff]
    %v80 = vld [vmem:[#allocation5 + $0x48] sm:$0xff]
    %v81 = vld [vmem:[#allocation5 + $0x50] sm:$0xff]
    %v82 = vld [vmem:[#allocation5 + $0x58] sm:$0xff]
    %v83 = vld [vmem:[#allocation5 + $0x60] sm:$0xff]
    %v84 = vld [vmem:[#allocation5 + $0x68] sm:$0xff]
    %v85 = vld [vmem:[#allocation5 + $0x70] sm:$0xff]
    %v86 = vld [vmem:[#allocation5 + $0x78] sm:$0xff]
    %v87 = vld [vmem:[#allocation5 + $0x80] sm:$0xff]
    %v88 = vld [vmem:[#allocation5 + $0x88] sm:$0xff]
    %v89 = vld [vmem:[#allocation5 + $0x90] sm:$0xff]
    %v90 = vld [vmem:[#allocation5 + $0x98] sm:$0xff]
    %v91 = vld [vmem:[%s2] sm:$0x3]
    %v93 = vlaneseq
    %v94 = vshrl.u32 %v93, 7
    %v95 = vsub.s32 0, %v94
    %v96 = vrot.slane %v91, %v95
    %v97 = vlaneseq
    %v98 = vshrl.u32 %v97, 7
    %v99 = vsub.s32 1, %v98
    %v100 = vrot.slane %v91, %v99
    %v105 = vunpack.c.l.b16 %v69
    %v106 = vunpack.c.h.b16 %v69
    %v107 = vunpack.c.l.b16 %v70
    %v108 = vunpack.c.h.b16 %v70
    %v109 = vpack.c.b16 %v107, %v105
    %v110 = vpack.c.b16 %v108, %v106
    %v132 = vunpack.c.l.b16 %v71
    %v133 = vunpack.c.h.b16 %v71
    %v134 = vunpack.c.l.b16 %v72
    %v135 = vunpack.c.h.b16 %v72
    %v136 = vunpack.c.l.b16 %v73
    %v137 = vunpack.c.h.b16 %v73
    %v138 = vunpack.c.l.b16 %v74
    %v139 = vunpack.c.h.b16 %v74
    %v140 = vunpack.c.l.b16 %v75
    %v141 = vunpack.c.h.b16 %v75
    %v142 = vunpack.c.l.b16 %v76
    %v143 = vunpack.c.h.b16 %v76
    %v144 = vunpack.c.l.b16 %v77
    %v145 = vunpack.c.h.b16 %v77
    %v146 = vunpack.c.l.b16 %v78
    %v147 = vunpack.c.h.b16 %v78
    %v148 = vunpack.c.l.b16 %v79
    %v149 = vunpack.c.h.b16 %v79
    %v150 = vunpack.c.l.b16 %v80
    %v151 = vunpack.c.h.b16 %v80
    %v152 = vunpack.c.l.b16 %v81
    %v153 = vunpack.c.h.b16 %v81
    %v154 = vunpack.c.l.b16 %v82
    %v155 = vunpack.c.h.b16 %v82
    %v156 = vunpack.c.l.b16 %v83
    %v157 = vunpack.c.h.b16 %v83
    %v158 = vunpack.c.l.b16 %v84
    %v159 = vunpack.c.h.b16 %v84
    %v160 = vunpack.c.l.b16 %v85
    %v161 = vunpack.c.h.b16 %v85
    %v162 = vunpack.c.l.b16 %v86
    %v163 = vunpack.c.h.b16 %v86
    %v164 = vunpack.c.l.b16 %v87
    %v165 = vunpack.c.h.b16 %v87
    %v166 = vunpack.c.l.b16 %v88
    %v167 = vunpack.c.h.b16 %v88
    %v168 = vunpack.c.l.b16 %v89
    %v169 = vunpack.c.h.b16 %v89
    %v170 = vunpack.c.l.b16 %v90
    %v171 = vunpack.c.h.b16 %v90
    %v172 = vpack.c.b16 %v134, %v132
    %v173 = vpack.c.b16 %v135, %v133
    %v174 = vpack.c.b16 %v138, %v136
    %v175 = vpack.c.b16 %v139, %v137
    %v176 = vpack.c.b16 %v142, %v140
    %v177 = vpack.c.b16 %v143, %v141
    %v178 = vpack.c.b16 %v146, %v144
    %v179 = vpack.c.b16 %v147, %v145
    %v180 = vpack.c.b16 %v150, %v148
    %v181 = vpack.c.b16 %v151, %v149
    %v182 = vpack.c.b16 %v154, %v152
    %v183 = vpack.c.b16 %v155, %v153
    %v184 = vpack.c.b16 %v158, %v156
    %v185 = vpack.c.b16 %v159, %v157
    %v186 = vpack.c.b16 %v162, %v160
    %v187 = vpack.c.b16 %v163, %v161
    %v188 = vpack.c.b16 %v166, %v164
    %v189 = vpack.c.b16 %v167, %v165
    %v190 = vpack.c.b16 %v170, %v168
    %v191 = vpack.c.b16 %v171, %v169
    %vm212 = vcmask 261120
    %v214 = vsel %vm212, %v110, 0
    %216 = vmatprep.subr.bf16.mxu0 %v187
    %217 = vmatpush1.bf16.msra.mxu0 %v186
    %218 = vmatprep.subr.bf16.mxu0 %v185
    %219 = vmatpush1.bf16.msra.mxu0 %v184
    %220 = vmatprep.subr.bf16.mxu0 %v183
    %221 = vmatpush1.bf16.msra.mxu0 %v182
    %222 = vmatprep.subr.bf16.mxu0 %v181
    %223 = vmatpush1.bf16.msra.mxu0 %v180
    %224 = vmatprep.subr.bf16.mxu0 %v179
    %225 = vmatpush1.bf16.msra.mxu0 %v178
    %226 = vmatprep.subr.bf16.mxu0 %v177
    %227 = vmatpush1.bf16.msra.mxu0 %v176
    %228 = vmatprep.subr.bf16.mxu0 %v175
    %229 = vmatpush1.bf16.msra.mxu0 %v174
    %230 = vmatprep.subr.bf16.mxu0 %v173
    %231 = vmatpush1.bf16.msra.mxu0 %v172
    %232 = vmatprep.subr.bf16.mxu0 0
    %233 = vmatpush2.bf16.msra.mxu0 0
    %234 = vmatprep.subr.bf16.mxu0 0
    %235 = vmatpush2.bf16.msra.mxu0 0
    %236 = vmatprep.subr.bf16.mxu0 0
    %237 = vmatpush2.bf16.msra.mxu0 0
    %238 = vmatprep.subr.bf16.mxu0 0
    %239 = vmatpush2.bf16.msra.mxu0 0
    %240 = vmatprep.subr.bf16.mxu0 0
    %241 = vmatpush2.bf16.msra.mxu0 0
    %242 = vmatprep.subr.bf16.mxu0 0
    %243 = vmatpush2.bf16.msra.mxu0 0
    %244 = vmatprep.subr.bf16.mxu0 %v191
    %245 = vmatpush2.bf16.msra.mxu0 %v190
    %246 = vmatprep.subr.bf16.mxu0 %v189
    %247 = vmatpush2.bf16.msra.mxu0 %v188
    %248 = vmatprep.mubr.bf16.mxu0 %v214
    %249 = vmatmul.mubr.bf16.gmra.mxu0 %v109
    %v250 = vpop.f32.mrf.mxu0
    %v251 = vadd.f32 %v96, %v250
    %v252 = vpop.f32.mrf.mxu0
    %v253 = vadd.f32 %v100, %v252
    %v254 = vpop.f32.mrf.mxu0
    %v255 = vadd.f32 %v96, %v254
    %v256 = vpop.f32.mrf.mxu0
    %v257 = vadd.f32 %v100, %v256
    %258 = vdwg.mxu0
    %v259 = vadd.f32 %v251, %v253
    %260 = vadd.xlane.f32.xlu0 %v259
    %v261 = vpop.xlane.xlu0 %260
    %v262 = vadd.f32 %v255, %v257
    %263 = vadd.xlane.f32.xlu0 %v262
    %v264 = vpop.xlane.xlu0 %263
    %v265 = vrcp.pop 256.0
    %v266 = vmul.f32 %v261, %v265
    %v267 = vmul.f32 %v264, %v265
    %v268 = vsub.f32 %v251, %v266
    %v269 = vsub.f32 %v253, %v266
    %v270 = vsub.f32 %v255, %v267
    %v271 = vsub.f32 %v257, %v267
    %v272 = vmul.f32 %v268, %v268
    %v273 = vmul.f32 %v269, %v269
    %v274 = vmul.f32 %v270, %v270
    %v275 = vmul.f32 %v271, %v271
    %v276 = vadd.f32 %v272, %v273
    %277 = vadd.xlane.f32.xlu0 %v276
    %v278 = vpop.xlane.xlu0 %277
    %v279 = vadd.f32 %v274, %v275
    %280 = vadd.xlane.f32.xlu0 %v279
    %v281 = vpop.xlane.xlu0 %280
    %v282 = vmul.f32 %v278, %v265
    %v283 = vmul.f32 %v281, %v265
    %v284 = vadd.f32 %v282, 1e-05
    %v285 = vadd.f32 %v283, 1e-05
    %v286 = vrsqrt.pop %v284
    %v287 = vrsqrt.pop %v285
    %v288 = vmul.f32 %v268, %v286
    %v289 = vmul.f32 %v269, %v286
    %v290 = vmul.f32 %v270, %v287
    %v291 = vmul.f32 %v271, %v287
    %v292 = vld [vmem:[%s3] sm:$0x3]
    %v294 = vlaneseq
    %v295 = vshrl.u32 %v294, 7
    %v296 = vsub.s32 0, %v295
    %v297 = vrot.slane %v292, %v296
    %v298 = vlaneseq
    %v299 = vshrl.u32 %v298, 7
    %v300 = vsub.s32 1, %v299
    %v301 = vrot.slane %v292, %v300
    %v304 = vmul.f32 %v288, %v297
    %v305 = vmul.f32 %v289, %v301
    %v306 = vmul.f32 %v290, %v297
    %v307 = vmul.f32 %v291, %v301
    %v308 = vld [vmem:[%s4] sm:$0x3]
    %v310 = vlaneseq
    %v311 = vshrl.u32 %v310, 7
    %v312 = vsub.s32 0, %v311
    %v313 = vrot.slane %v308, %v312
    %v314 = vlaneseq
    %v315 = vshrl.u32 %v314, 7
    %v316 = vsub.s32 1, %v315
    %v317 = vrot.slane %v308, %v316
    %v320 = vadd.f32 %v304, %v313
    %v321 = vadd.f32 %v305, %v317
    %v322 = vadd.f32 %v306, %v313
    %v323 = vadd.f32 %v307, %v317
    %v324 = vmax.f32 %v320, 0.0
    %v325 = vmax.f32 %v321, 0.0
    %v326 = vmax.f32 %v322, 0.0
    %v327 = vmax.f32 %v323, 0.0
    %v328 = vpack.c.bf16 %v326, %v324
    %v329 = vpack.c.bf16 %v327, %v325
    %v330 = vld [vmem:[#allocation7] sm:$0xf]
    %v331 = vld [vmem:[#allocation7 + $0x4] sm:$0xf]
    %v332 = vld [vmem:[#allocation7 + $0x8] sm:$0xf]
    %v333 = vld [vmem:[#allocation7 + $0xc] sm:$0xf]
    %v334 = vld [vmem:[#allocation7 + $0x10] sm:$0xf]
    %v335 = vld [vmem:[#allocation7 + $0x14] sm:$0xf]
    %v336 = vld [vmem:[#allocation7 + $0x18] sm:$0xf]
    %v337 = vld [vmem:[#allocation7 + $0x1c] sm:$0xf]
    %v338 = vld [vmem:[#allocation7 + $0x20] sm:$0xf]
    %v339 = vld [vmem:[#allocation7 + $0x24] sm:$0xf]
    %v340 = vld [vmem:[#allocation7 + $0x28] sm:$0xf]
    %v341 = vld [vmem:[#allocation7 + $0x2c] sm:$0xf]
    %v342 = vld [vmem:[#allocation7 + $0x30] sm:$0xf]
    %v343 = vld [vmem:[#allocation7 + $0x34] sm:$0xf]
    %v344 = vld [vmem:[#allocation7 + $0x38] sm:$0xf]
    %v345 = vld [vmem:[#allocation7 + $0x3c] sm:$0xf]
    %v346 = vld [vmem:[#allocation7 + $0x40] sm:$0xf]
    %v347 = vld [vmem:[#allocation7 + $0x44] sm:$0xf]
    %v348 = vld [vmem:[#allocation7 + $0x48] sm:$0xf]
    %v349 = vld [vmem:[#allocation7 + $0x4c] sm:$0xf]
    %v350 = vld [vmem:[#allocation7 + $0x50] sm:$0xf]
    %v351 = vld [vmem:[#allocation7 + $0x54] sm:$0xf]
    %v352 = vld [vmem:[#allocation7 + $0x58] sm:$0xf]
    %v353 = vld [vmem:[#allocation7 + $0x5c] sm:$0xf]
    %v354 = vld [vmem:[#allocation7 + $0x60] sm:$0xf]
    %v355 = vld [vmem:[#allocation7 + $0x64] sm:$0xf]
    %v356 = vld [vmem:[#allocation7 + $0x68] sm:$0xf]
    %v357 = vld [vmem:[#allocation7 + $0x6c] sm:$0xf]
    %v358 = vld [vmem:[#allocation7 + $0x70] sm:$0xf]
    %v359 = vld [vmem:[#allocation7 + $0x74] sm:$0xf]
    %v360 = vld [vmem:[#allocation7 + $0x78] sm:$0xf]
    %v361 = vld [vmem:[#allocation7 + $0x7c] sm:$0xf]
    %v362 = vld [vmem:[%s6] sm:$0x1]
    %v364 = vlaneseq
    %v365 = vshrl.u32 %v364, 7
    %v366 = vsub.s32 0, %v365
    %v367 = vrot.slane %v362, %v366
    %v401 = vunpack.c.l.b16 %v330
    %v402 = vunpack.c.l.b16 %v331
    %v403 = vunpack.c.l.b16 %v332
    %v404 = vunpack.c.l.b16 %v333
    %v405 = vunpack.c.l.b16 %v334
    %v406 = vunpack.c.l.b16 %v335
    %v407 = vunpack.c.l.b16 %v336
    %v408 = vunpack.c.l.b16 %v337
    %v409 = vunpack.c.l.b16 %v338
    %v410 = vunpack.c.l.b16 %v339
    %v411 = vunpack.c.l.b16 %v340
    %v412 = vunpack.c.l.b16 %v341
    %v413 = vunpack.c.l.b16 %v342
    %v414 = vunpack.c.l.b16 %v343
    %v415 = vunpack.c.l.b16 %v344
    %v416 = vunpack.c.l.b16 %v345
    %v417 = vunpack.c.l.b16 %v346
    %v418 = vunpack.c.l.b16 %v347
    %v419 = vunpack.c.l.b16 %v348
    %v420 = vunpack.c.l.b16 %v349
    %v421 = vunpack.c.l.b16 %v350
    %v422 = vunpack.c.l.b16 %v351
    %v423 = vunpack.c.l.b16 %v352
    %v424 = vunpack.c.l.b16 %v353
    %v425 = vunpack.c.l.b16 %v354
    %v426 = vunpack.c.l.b16 %v355
    %v427 = vunpack.c.l.b16 %v356
    %v428 = vunpack.c.l.b16 %v357
    %v429 = vunpack.c.l.b16 %v358
    %v430 = vunpack.c.l.b16 %v359
    %v431 = vunpack.c.l.b16 %v360
    %v432 = vunpack.c.l.b16 %v361
    %v433 = vpack.c.b16 %v402, %v401
    %v434 = vpack.c.b16 %v404, %v403
    %v435 = vpack.c.b16 %v406, %v405
    %v436 = vpack.c.b16 %v408, %v407
    %v437 = vpack.c.b16 %v410, %v409
    %v438 = vpack.c.b16 %v412, %v411
    %v439 = vpack.c.b16 %v414, %v413
    %v440 = vpack.c.b16 %v416, %v415
    %v441 = vpack.c.b16 %v418, %v417
    %v442 = vpack.c.b16 %v420, %v419
    %v443 = vpack.c.b16 %v422, %v421
    %v444 = vpack.c.b16 %v424, %v423
    %v445 = vpack.c.b16 %v426, %v425
    %v446 = vpack.c.b16 %v428, %v427
    %v447 = vpack.c.b16 %v430, %v429
    %v448 = vpack.c.b16 %v432, %v431
    %465 = vmatprep.subr.bf16.mxu0 0
    %466 = vmatpush1.bf16.msra.mxu0 %v440
    %467 = vmatprep.subr.bf16.mxu0 0
    %468 = vmatpush1.bf16.msra.mxu0 %v439
    %469 = vmatprep.subr.bf16.mxu0 0
    %470 = vmatpush1.bf16.msra.mxu0 %v438
    %471 = vmatprep.subr.bf16.mxu0 0
    %472 = vmatpush1.bf16.msra.mxu0 %v437
    %473 = vmatprep.subr.bf16.mxu0 0
    %474 = vmatpush1.bf16.msra.mxu0 %v436
    %475 = vmatprep.subr.bf16.mxu0 0
    %476 = vmatpush1.bf16.msra.mxu0 %v435
    %477 = vmatprep.subr.bf16.mxu0 0
    %478 = vmatpush1.bf16.msra.mxu0 %v434
    %479 = vmatprep.subr.bf16.mxu0 0
    %480 = vmatpush1.bf16.msra.mxu0 %v433
    %481 = vmatprep.subr.bf16.mxu0 0
    %482 = vmatpush2.bf16.msra.mxu0 %v448
    %483 = vmatprep.subr.bf16.mxu0 0
    %484 = vmatpush2.bf16.msra.mxu0 %v447
    %485 = vmatprep.subr.bf16.mxu0 0
    %486 = vmatpush2.bf16.msra.mxu0 %v446
    %487 = vmatprep.subr.bf16.mxu0 0
    %488 = vmatpush2.bf16.msra.mxu0 %v445
    %489 = vmatprep.subr.bf16.mxu0 0
    %490 = vmatpush2.bf16.msra.mxu0 %v444
    %491 = vmatprep.subr.bf16.mxu0 0
    %492 = vmatpush2.bf16.msra.mxu0 %v443
    %493 = vmatprep.subr.bf16.mxu0 0
    %494 = vmatpush2.bf16.msra.mxu0 %v442
    %495 = vmatprep.subr.bf16.mxu0 0
    %496 = vmatpush2.bf16.msra.mxu0 %v441
    %497 = vmatprep.mubr.bf16.mxu0 %v329
    %498 = vmatmul.mubr.bf16.gmra.mxu0 %v328
    %v499 = vpop.f32.mrf.mxu0
    %v500 = vadd.f32 %v367, %v499
    %v501 = vpop.f32.mrf.mxu0
    %v502 = vpop.f32.mrf.mxu0
    %v503 = vadd.f32 %v367, %v502
    %v504 = vpop.f32.mrf.mxu0
    %505 = vdwg.mxu0
    %506 = vst [vmem:[#allocation8] sm:$0xff] %v500
    %507 = vst [vmem:[#allocation8 + $0x8] sm:$0xff] %v503
    // Predicated region
    $region42: #{tpu_custom_call.1} parent=1 // pred_check
      _
    $region43: #{tpu_custom_call.1} parent=1 // pred_check_branch
      %509 = sbr.rel (0) target = $region45
    $region44: #{tpu_custom_call.1} parent=1 // pred_region
      %s511 = ssub.s32 256, 256
      %512 = vsyncadd [#allocation4], %s511
      %s513 = sshll.u32 [#allocation8], 4
      %s514 = int_to_ptr.vmem [resolvable:$true] %s513
      %519 = dma.vmem_to_hbm [thread:$0]  %s514, 256, %s7, [#allocation4], 128, 128, 8
    $region45: #{tpu_custom_call.1} parent=1 // pred_fallthru
      _
    // Predicated region
    $region46: #{tpu_custom_call.1} parent=1 // pred_check
      _
    $region47: #{tpu_custom_call.1} parent=1 // pred_check_branch
      %521 = sbr.rel (0) target = $region49
    $region48: #{tpu_custom_call.1} parent=1 // pred_region
      %522 = dma.done [#allocation4], 256
    $region49: #{tpu_custom_call.1} parent=1 // pred_fallthru
      _
    %523 = vsyncpa [#allocation3], 1
    %524 = vsyncpa [#allocation6], 1
    %525 = vsyncpa [#allocation4], 1

</llo_original>
